<compile_context>
chip_gen: v6e
topology: v6e:2x2x1
jax: 0.10.0
libtpu: 0.0.40
codegen_flags: <defaults>
</compile_context>

<pallas_src>
import jax
import jax.numpy as jnp
from jax.experimental import pallas as pl
from jax.experimental.pallas import tpu as pltpu

LANE = 128


def _round_up(x, m):
    return (x + m - 1) // m * m


def _make_kernel(ngrams, v_pad):
    def kernel(idx_ref,                       # (tile_b, NG_pad) int32
               tab_ref, b1_ref,               # (V_pad, H_pad) bf16, (1, H_pad) f32
               w2_ref, b2_ref,
               w3_ref, b3_ref,
               w4_ref, b4_ref,                # b4 padded class lanes carry -1e30
               out_ref):                      # (tile_b, C_pad) f32
        idx = idx_ref[...]
        tile_b = idx.shape[0]

        # EmbeddingBag as an n-gram count matrix (VPU) -> one MXU matmul against
        # the VMEM-resident pre-projected table (mean pooling + fc_1 in one shot).
        iota_v = jax.lax.broadcasted_iota(jnp.int32, (tile_b, v_pad), 1)
        counts = jnp.zeros((tile_b, v_pad), jnp.float32)
        for g in range(ngrams):                               # static unroll (6)
            counts = counts + (iota_v == idx[:, g:g + 1]).astype(jnp.float32)
        counts = counts.astype(jnp.bfloat16)                  # exact: small ints

        h = jnp.dot(counts, tab_ref[...], preferred_element_type=jnp.float32) + b1_ref[...]
        h = jnp.maximum(h, 0.0).astype(jnp.bfloat16)
        h = jnp.dot(h, w2_ref[...], preferred_element_type=jnp.float32) + b2_ref[...]
        h = jnp.maximum(h, 0.0).astype(jnp.bfloat16)
        h = jnp.dot(h, w3_ref[...], preferred_element_type=jnp.float32) + b3_ref[...]
        h = jnp.maximum(h, 0.0).astype(jnp.bfloat16)
        logits = jnp.dot(h, w4_ref[...], preferred_element_type=jnp.float32) + b4_ref[...]

        # Padded class lanes were given bias -1e30 in the wrapper -> exp() == 0.
        m = jnp.max(logits, axis=-1, keepdims=True)
        shifted = logits - m
        lse = jnp.log(jnp.sum(jnp.exp(shifted), axis=-1, keepdims=True))
        out_ref[...] = (shifted - lse).astype(out_ref.dtype)

    return kernel


def fasttext_forward(indices, embed_table, params, num_classes, *, tile_b=256):
    """indices: (B, NGRAMS) int32 ids into the (V, D) embedding table."""
    B, ngrams = indices.shape
    V, D = embed_table.shape
    (w1, b1), (w2, b2), (w3, b3), (w4, b4) = params
    H = w1.shape[1]
    C = num_classes

    H_pad = _round_up(H, LANE)
    C_pad = _round_up(C, LANE)
    V_pad = _round_up(V, LANE)
    NG_pad = _round_up(ngrams, LANE)

    # Batch tiling: big tiles for MXU utilization (default 256), clamped so tiny
    # batches don't pad wastefully and (when possible) the grid has >=2 steps so
    # v7x's two TensorCores both get work.
    if B <= 8:
        tile_b = 8
    else:
        tile_b = min(tile_b, _round_up((B + 1) // 2, 8))
    tile_b = max(8, (tile_b // 8) * 8)
    B_pad = _round_up(B, tile_b)
    grid = (B_pad // tile_b,)

    def pad2(a, r, c, dtype, fill=0.0):
        out = jnp.full((r, c), fill, dtype)
        return out.at[:a.shape[0], :a.shape[1]].set(a.astype(dtype))

    # Fold the EmbeddingBag mean (1/ngrams) and fc_1's weight into one table.
    tab = jnp.dot(embed_table.astype(jnp.float32), w1.astype(jnp.float32)) * (1.0 / ngrams)
    tab_p = pad2(tab, V_pad, H_pad, jnp.bfloat16)
    b1_p = pad2(b1, 1, H_pad, jnp.float32)
    w2_p = pad2(w2, H_pad, H_pad, jnp.bfloat16); b2_p = pad2(b2, 1, H_pad, jnp.float32)
    w3_p = pad2(w3, H_pad, H_pad, jnp.bfloat16); b3_p = pad2(b3, 1, H_pad, jnp.float32)
    w4_p = pad2(w4, H_pad, C_pad, jnp.bfloat16)
    # Class-padding mask baked into the last bias: padded lanes -> -1e30.
    b4_p = pad2(b4, 1, C_pad, jnp.float32, fill=-1e30)

    idx_p = jnp.zeros((B_pad, NG_pad), jnp.int32).at[:B, :ngrams].set(indices.astype(jnp.int32))

    def const_spec(shape):
        return pl.BlockSpec(shape, lambda i: (0, 0))   # VMEM-resident across the grid

    kernel = _make_kernel(ngrams, V_pad)

    flops = 2 * B_pad * (V_pad * H_pad + 2 * H_pad * H_pad + H_pad * C_pad)
    bytes_accessed = (idx_p.size * 4
                      + (tab_p.size + w2_p.size + w3_p.size + w4_p.size) * 2
                      + (b1_p.size + b2_p.size + b3_p.size + b4_p.size) * 4
                      + B_pad * C_pad * 4)
    cost = pl.CostEstimate(flops=int(flops),
                           transcendentals=int(B_pad * (C_pad + 1)),
                           bytes_accessed=int(bytes_accessed))

    out = pl.pallas_call(
        kernel,
        out_shape=jax.ShapeDtypeStruct((B_pad, C_pad), jnp.float32),
        grid_spec=pltpu.PrefetchScalarGridSpec(
            num_scalar_prefetch=0,
            grid=grid,
            in_specs=[
                pl.BlockSpec((tile_b, NG_pad), lambda i: (i, 0)),
                const_spec((V_pad, H_pad)), const_spec((1, H_pad)),
                const_spec((H_pad, H_pad)), const_spec((1, H_pad)),
                const_spec((H_pad, H_pad)), const_spec((1, H_pad)),
                const_spec((H_pad, C_pad)), const_spec((1, C_pad)),
            ],
            out_specs=pl.BlockSpec((tile_b, C_pad), lambda i: (i, 0)),
        ),
        compiler_params=pltpu.CompilerParams(
            dimension_semantics=("parallel",)),
        cost_estimate=cost,
    )(idx_p, tab_p, b1_p, w2_p, b2_p, w3_p, b3_p, w4_p, b4_p)

    # TODO(synk): a real FastText vocab (millions of hash buckets) cannot be
    # VMEM-resident; that case needs the double-buffered HBM row-gather path.
    return out[:B, :C]


def init_params(key, embedding_dim, hidden_size, num_classes):
    """Deterministic synthetic parameters (PyTorch Linear shapes, pre-transposed)."""
    ks = jax.random.split(key, 9)

    def lin(kw, kb, fan_in, fan_out):
        # weight stored as (in, out) == torch weight.T ; bias as (1, out)
        w = jax.random.normal(kw, (fan_in, fan_out), jnp.float32) * 0.05
        b = jax.random.normal(kb, (1, fan_out), jnp.float32) * 0.05
        return w, b

    p1 = lin(ks[0], ks[1], embedding_dim, hidden_size)
    p2 = lin(ks[2], ks[3], hidden_size, hidden_size)
    p3 = lin(ks[4], ks[5], hidden_size, hidden_size)
    p4 = lin(ks[6], ks[7], hidden_size, num_classes)
    return (p1, p2, p3, p4), ks[8]


def _reference_forward(indices, embed_table, params):
    """Pure-JAX f32 reference of the original module's forward pass."""
    (w1, b1), (w2, b2), (w3, b3), (w4, b4) = params
    x = jnp.mean(embed_table[indices], axis=1)          # EmbeddingBag(mode='mean')
    h = jax.nn.relu(x @ w1 + b1)
    h = jax.nn.relu(h @ w2 + b2)
    h = jax.nn.relu(h @ w3 + b3)
    logits = h @ w4 + b4
    return jax.nn.log_softmax(logits, axis=-1)


if __name__ == "__main__":
    num_classes = 11
    hidden_size = 32
    embedding_dim = 32   # synthetic FastText embedding dim
    vocab = 64           # synthetic subword-ngram vocab size
    batch = 24           # exercises multi-step grid + ragged batch padding
    ngrams = 6           # n-gram ids per sample

    key = jax.random.PRNGKey(0)
    params, key = init_params(key, embedding_dim, hidden_size, num_classes)
    k_emb, k_idx = jax.random.split(key)

    # TODO(synk): real FastTextEmbeddingBag hashes character n-grams from a
    # pretrained .bin model; here we use a deterministic synthetic table + ids.
    embed_table = jax.random.normal(k_emb, (vocab, embedding_dim), jnp.float32) * 0.1
    X = jax.random.randint(k_idx, (batch, ngrams), 0, vocab, dtype=jnp.int32)

    logp = fasttext_forward(X, embed_table, params, num_classes)
    jax.block_until_ready(logp)

    # sanity 1: shape + rows of a log-softmax exponentiate/sum to 1
    assert logp.shape == (batch, num_classes)
    row_sums = jnp.sum(jnp.exp(logp), axis=-1)
    assert bool(jnp.all(jnp.abs(row_sums - 1.0) < 1e-4))

    # sanity 2: matches the pure-JAX f32 reference (bf16 MXU tolerance)
    ref = _reference_forward(X, embed_table, params)
    assert bool(jnp.max(jnp.abs(logp - ref)) < 1e-2)

    print("KERNEL_OK")
</pallas_src>

<mosaic_0001>
module attributes {stable_mosaic.version = 11 : i64} {
  func.func @kernel(%arg0: i32, %arg1: memref<16x128xi32, #tpu.memory_space<vmem>>, %arg2: memref<128x128xbf16, #tpu.memory_space<vmem>>, %arg3: memref<1x128xf32, #tpu.memory_space<vmem>>, %arg4: memref<128x128xbf16, #tpu.memory_space<vmem>>, %arg5: memref<1x128xf32, #tpu.memory_space<vmem>>, %arg6: memref<128x128xbf16, #tpu.memory_space<vmem>>, %arg7: memref<1x128xf32, #tpu.memory_space<vmem>>, %arg8: memref<128x128xbf16, #tpu.memory_space<vmem>>, %arg9: memref<1x128xf32, #tpu.memory_space<vmem>>, %arg10: memref<16x128xf32, #tpu.memory_space<vmem>>) attributes {dimension_semantics = [#tpu.dimension_semantics<parallel>], iteration_bounds = array<i64: 2>, scalar_prefetch = 0 : i64, scratch_operands = 0 : i64, tpu.core_type = #tpu.core_type<tc>, window_params = [{transform_indices = @transform_0, window_bounds = array<i64: 16, 128>}, {pipeline_mode = #tpu.pipeline_mode<synchronous>, transform_indices = @transform_1, window_bounds = array<i64: 128, 128>}, {pipeline_mode = #tpu.pipeline_mode<synchronous>, transform_indices = @transform_2, window_bounds = array<i64: 1, 128>}, {pipeline_mode = #tpu.pipeline_mode<synchronous>, transform_indices = @transform_3, window_bounds = array<i64: 128, 128>}, {pipeline_mode = #tpu.pipeline_mode<synchronous>, transform_indices = @transform_4, window_bounds = array<i64: 1, 128>}, {pipeline_mode = #tpu.pipeline_mode<synchronous>, transform_indices = @transform_5, window_bounds = array<i64: 128, 128>}, {pipeline_mode = #tpu.pipeline_mode<synchronous>, transform_indices = @transform_6, window_bounds = array<i64: 1, 128>}, {pipeline_mode = #tpu.pipeline_mode<synchronous>, transform_indices = @transform_7, window_bounds = array<i64: 128, 128>}, {pipeline_mode = #tpu.pipeline_mode<synchronous>, transform_indices = @transform_8, window_bounds = array<i64: 1, 128>}, {transform_indices = @transform_9, window_bounds = array<i64: 16, 128>}]} {
    %c0 = arith.constant 0 : index
    %c0_0 = arith.constant 0 : index
    %0 = vector.load %arg1[%c0, %c0_0] : memref<16x128xi32, #tpu.memory_space<vmem>>, vector<16x128xi32>
    %1 = tpu.iota {dimensions = array<i32: 1>} : vector<16x128xi32>
    %cst = arith.constant 0.000000e+00 : f32
    %2 = vector.broadcast %cst : f32 to vector<16x128xf32>
    %3 = vector.extract_strided_slice %0 {offsets = [0, 0], sizes = [16, 1], strides = [1, 1]} : vector<16x128xi32> to vector<16x1xi32>
    %4 = vector.broadcast %3 : vector<16x1xi32> to vector<16x128xi32>
    %5 = arith.cmpi eq, %1, %4 : vector<16x128xi32>
    %6 = arith.extui %5 : vector<16x128xi1> to vector<16x128xi32>
    %7 = arith.sitofp %6 : vector<16x128xi32> to vector<16x128xf32>
    %8 = arith.addf %2, %7 : vector<16x128xf32>
    %9 = vector.extract_strided_slice %0 {offsets = [0, 1], sizes = [16, 1], strides = [1, 1]} : vector<16x128xi32> to vector<16x1xi32>
    %10 = vector.broadcast %9 : vector<16x1xi32> to vector<16x128xi32>
    %11 = arith.cmpi eq, %1, %10 : vector<16x128xi32>
    %12 = arith.extui %11 : vector<16x128xi1> to vector<16x128xi32>
    %13 = arith.sitofp %12 : vector<16x128xi32> to vector<16x128xf32>
    %14 = arith.addf %8, %13 : vector<16x128xf32>
    %15 = vector.extract_strided_slice %0 {offsets = [0, 2], sizes = [16, 1], strides = [1, 1]} : vector<16x128xi32> to vector<16x1xi32>
    %16 = vector.broadcast %15 : vector<16x1xi32> to vector<16x128xi32>
    %17 = arith.cmpi eq, %1, %16 : vector<16x128xi32>
    %18 = arith.extui %17 : vector<16x128xi1> to vector<16x128xi32>
    %19 = arith.sitofp %18 : vector<16x128xi32> to vector<16x128xf32>
    %20 = arith.addf %14, %19 : vector<16x128xf32>
    %21 = vector.extract_strided_slice %0 {offsets = [0, 3], sizes = [16, 1], strides = [1, 1]} : vector<16x128xi32> to vector<16x1xi32>
    %22 = vector.broadcast %21 : vector<16x1xi32> to vector<16x128xi32>
    %23 = arith.cmpi eq, %1, %22 : vector<16x128xi32>
    %24 = arith.extui %23 : vector<16x128xi1> to vector<16x128xi32>
    %25 = arith.sitofp %24 : vector<16x128xi32> to vector<16x128xf32>
    %26 = arith.addf %20, %25 : vector<16x128xf32>
    %27 = vector.extract_strided_slice %0 {offsets = [0, 4], sizes = [16, 1], strides = [1, 1]} : vector<16x128xi32> to vector<16x1xi32>
    %28 = vector.broadcast %27 : vector<16x1xi32> to vector<16x128xi32>
    %29 = arith.cmpi eq, %1, %28 : vector<16x128xi32>
    %30 = arith.extui %29 : vector<16x128xi1> to vector<16x128xi32>
    %31 = arith.sitofp %30 : vector<16x128xi32> to vector<16x128xf32>
    %32 = arith.addf %26, %31 : vector<16x128xf32>
    %33 = vector.extract_strided_slice %0 {offsets = [0, 5], sizes = [16, 1], strides = [1, 1]} : vector<16x128xi32> to vector<16x1xi32>
    %34 = vector.broadcast %33 : vector<16x1xi32> to vector<16x128xi32>
    %35 = arith.cmpi eq, %1, %34 : vector<16x128xi32>
    %36 = arith.extui %35 : vector<16x128xi1> to vector<16x128xi32>
    %37 = arith.sitofp %36 : vector<16x128xi32> to vector<16x128xf32>
    %38 = arith.addf %32, %37 : vector<16x128xf32>
    %39 = arith.truncf %38 : vector<16x128xf32> to vector<16x128xbf16>
    %c0_1 = arith.constant 0 : index
    %c0_2 = arith.constant 0 : index
    %40 = vector.load %arg2[%c0_1, %c0_2] : memref<128x128xbf16, #tpu.memory_space<vmem>>, vector<128x128xbf16>
    %cst_3 = arith.constant dense<0.000000e+00> : vector<16x128xf32>
    %41 = tpu.matmul %39, %40, %cst_3 {dimension_numbers = #tpu.dot_dimension_numbers<[1], [0], [0], [1], [0, 0, 1, 1], [], []>} : vector<16x128xbf16>, vector<128x128xbf16>, vector<16x128xf32> -> vector<16x128xf32>
    %c0_4 = arith.constant 0 : index
    %c0_5 = arith.constant 0 : index
    %42 = vector.load %arg3[%c0_4, %c0_5] : memref<1x128xf32, #tpu.memory_space<vmem>>, vector<1x128xf32>
    %43 = vector.broadcast %42 : vector<1x128xf32> to vector<16x128xf32>
    %44 = arith.addf %41, %43 : vector<16x128xf32>
    %cst_6 = arith.constant 0.000000e+00 : f32
    %45 = vector.broadcast %cst_6 : f32 to vector<16x128xf32>
    %46 = arith.maximumf %44, %45 : vector<16x128xf32>
    %47 = arith.truncf %46 : vector<16x128xf32> to vector<16x128xbf16>
    %c0_7 = arith.constant 0 : index
    %c0_8 = arith.constant 0 : index
    %48 = vector.load %arg4[%c0_7, %c0_8] : memref<128x128xbf16, #tpu.memory_space<vmem>>, vector<128x128xbf16>
    %cst_9 = arith.constant dense<0.000000e+00> : vector<16x128xf32>
    %49 = tpu.matmul %47, %48, %cst_9 {dimension_numbers = #tpu.dot_dimension_numbers<[1], [0], [0], [1], [0, 0, 1, 1], [], []>} : vector<16x128xbf16>, vector<128x128xbf16>, vector<16x128xf32> -> vector<16x128xf32>
    %c0_10 = arith.constant 0 : index
    %c0_11 = arith.constant 0 : index
    %50 = vector.load %arg5[%c0_10, %c0_11] : memref<1x128xf32, #tpu.memory_space<vmem>>, vector<1x128xf32>
    %51 = vector.broadcast %50 : vector<1x128xf32> to vector<16x128xf32>
    %52 = arith.addf %49, %51 : vector<16x128xf32>
    %cst_12 = arith.constant 0.000000e+00 : f32
    %53 = vector.broadcast %cst_12 : f32 to vector<16x128xf32>
    %54 = arith.maximumf %52, %53 : vector<16x128xf32>
    %55 = arith.truncf %54 : vector<16x128xf32> to vector<16x128xbf16>
    %c0_13 = arith.constant 0 : index
    %c0_14 = arith.constant 0 : index
    %56 = vector.load %arg6[%c0_13, %c0_14] : memref<128x128xbf16, #tpu.memory_space<vmem>>, vector<128x128xbf16>
    %cst_15 = arith.constant dense<0.000000e+00> : vector<16x128xf32>
    %57 = tpu.matmul %55, %56, %cst_15 {dimension_numbers = #tpu.dot_dimension_numbers<[1], [0], [0], [1], [0, 0, 1, 1], [], []>} : vector<16x128xbf16>, vector<128x128xbf16>, vector<16x128xf32> -> vector<16x128xf32>
    %c0_16 = arith.constant 0 : index
    %c0_17 = arith.constant 0 : index
    %58 = vector.load %arg7[%c0_16, %c0_17] : memref<1x128xf32, #tpu.memory_space<vmem>>, vector<1x128xf32>
    %59 = vector.broadcast %58 : vector<1x128xf32> to vector<16x128xf32>
    %60 = arith.addf %57, %59 : vector<16x128xf32>
    %cst_18 = arith.constant 0.000000e+00 : f32
    %61 = vector.broadcast %cst_18 : f32 to vector<16x128xf32>
    %62 = arith.maximumf %60, %61 : vector<16x128xf32>
    %63 = arith.truncf %62 : vector<16x128xf32> to vector<16x128xbf16>
    %c0_19 = arith.constant 0 : index
    %c0_20 = arith.constant 0 : index
    %64 = vector.load %arg8[%c0_19, %c0_20] : memref<128x128xbf16, #tpu.memory_space<vmem>>, vector<128x128xbf16>
    %cst_21 = arith.constant dense<0.000000e+00> : vector<16x128xf32>
    %65 = tpu.matmul %63, %64, %cst_21 {dimension_numbers = #tpu.dot_dimension_numbers<[1], [0], [0], [1], [0, 0, 1, 1], [], []>} : vector<16x128xbf16>, vector<128x128xbf16>, vector<16x128xf32> -> vector<16x128xf32>
    %c0_22 = arith.constant 0 : index
    %c0_23 = arith.constant 0 : index
    %66 = vector.load %arg9[%c0_22, %c0_23] : memref<1x128xf32, #tpu.memory_space<vmem>>, vector<1x128xf32>
    %67 = vector.broadcast %66 : vector<1x128xf32> to vector<16x128xf32>
    %68 = arith.addf %65, %67 : vector<16x128xf32>
    %cst_24 = arith.constant dense<0xFF800000> : vector<16xf32>
    %69 = vector.multi_reduction <maximumf>, %68, %cst_24 [1] : vector<16x128xf32> to vector<16xf32>
    %70 = vector.shape_cast %69 : vector<16xf32> to vector<16x1xf32>
    %71 = vector.broadcast %70 : vector<16x1xf32> to vector<16x128xf32>
    %72 = arith.subf %68, %71 : vector<16x128xf32>
    %73 = math.exp %72 : vector<16x128xf32>
    %cst_25 = arith.constant dense<0.000000e+00> : vector<16xf32>
    %74 = vector.multi_reduction <add>, %73, %cst_25 [1] : vector<16x128xf32> to vector<16xf32>
    %75 = vector.shape_cast %74 : vector<16xf32> to vector<16x1xf32>
    %76 = math.log %75 : vector<16x1xf32>
    %77 = vector.broadcast %76 : vector<16x1xf32> to vector<16x128xf32>
    %78 = arith.subf %72, %77 : vector<16x128xf32>
    %c0_26 = arith.constant 0 : index
    %c0_27 = arith.constant 0 : index
    %79 = vector.load %arg10[%c0_26, %c0_27] : memref<16x128xf32, #tpu.memory_space<vmem>>, vector<16x128xf32>
    tpu.vector_store %arg10[%c0_26, %c0_27], %78 {strides = array<i32>} : memref<16x128xf32, #tpu.memory_space<vmem>>, vector<16x128xf32>,
    return
  }
  func.func @transform_0(%arg0: i32) -> (i32, i32) {
    %c0_i32 = arith.constant 0 : i32
    %c0_i32_0 = arith.constant 0 : i32
    return %arg0, %c0_i32 : i32, i32
  }
  func.func @transform_1(%arg0: i32) -> (i32, i32) {
    %c0_i32 = arith.constant 0 : i32
    %c0_i32_0 = arith.constant 0 : i32
    %c0_i32_1 = arith.constant 0 : i32
    return %c0_i32, %c0_i32_0 : i32, i32
  }
  func.func @transform_2(%arg0: i32) -> (i32, i32) {
    %c0_i32 = arith.constant 0 : i32
    %c0_i32_0 = arith.constant 0 : i32
    %c0_i32_1 = arith.constant 0 : i32
    return %c0_i32, %c0_i32_0 : i32, i32
  }
  func.func @transform_3(%arg0: i32) -> (i32, i32) {
    %c0_i32 = arith.constant 0 : i32
    %c0_i32_0 = arith.constant 0 : i32
    %c0_i32_1 = arith.constant 0 : i32
    return %c0_i32, %c0_i32_0 : i32, i32
  }
  func.func @transform_4(%arg0: i32) -> (i32, i32) {
    %c0_i32 = arith.constant 0 : i32
    %c0_i32_0 = arith.constant 0 : i32
    %c0_i32_1 = arith.constant 0 : i32
    return %c0_i32, %c0_i32_0 : i32, i32
  }
  func.func @transform_5(%arg0: i32) -> (i32, i32) {
    %c0_i32 = arith.constant 0 : i32
    %c0_i32_0 = arith.constant 0 : i32
    %c0_i32_1 = arith.constant 0 : i32
    return %c0_i32, %c0_i32_0 : i32, i32
  }
  func.func @transform_6(%arg0: i32) -> (i32, i32) {
    %c0_i32 = arith.constant 0 : i32
    %c0_i32_0 = arith.constant 0 : i32
    %c0_i32_1 = arith.constant 0 : i32
    return %c0_i32, %c0_i32_0 : i32, i32
  }
  func.func @transform_7(%arg0: i32) -> (i32, i32) {
    %c0_i32 = arith.constant 0 : i32
    %c0_i32_0 = arith.constant 0 : i32
    %c0_i32_1 = arith.constant 0 : i32
    return %c0_i32, %c0_i32_0 : i32, i32
  }
  func.func @transform_8(%arg0: i32) -> (i32, i32) {
    %c0_i32 = arith.constant 0 : i32
    %c0_i32_0 = arith.constant 0 : i32
    %c0_i32_1 = arith.constant 0 : i32
    return %c0_i32, %c0_i32_0 : i32, i32
  }
  func.func @transform_9(%arg0: i32) -> (i32, i32) {
    %c0_i32 = arith.constant 0 : i32
    %c0_i32_0 = arith.constant 0 : i32
    return %arg0, %c0_i32 : i32, i32
  }
}

</mosaic_0001>

<llo_original>
// kernel: tpu_custom_call.1
$region0: #{tpu_custom_call.1}
  #allocation0 [shape = 'u32[]', space=smem, size = 0x4, offset = 0x4, fixed_abs, tag = 'smem constant byte address 0x4 - core index']
  #allocation1 [shape = 'u32[144,128]{1,0:T(1,128)}', space=vmem, size = 0x12000, scoped, tag = 'internal scratch']
  %s0 = inlined_call_operand.hbm [shape: s32[32,128], index: 0, kind: input, shape index: {}]
  %s1 = inlined_call_operand.hbm [shape: bf16[128,128], index: 1, kind: input, shape index: {}]
  %s2 = inlined_call_operand.vmem [shape: f32[1,128], index: 2, kind: input, shape index: {}]
  %s3 = inlined_call_operand.hbm [shape: bf16[128,128], index: 3, kind: input, shape index: {}]
  %s4 = inlined_call_operand.vmem [shape: f32[1,128], index: 4, kind: input, shape index: {}]
  %s5 = inlined_call_operand.hbm [shape: bf16[128,128], index: 5, kind: input, shape index: {}]
  %s6 = inlined_call_operand.vmem [shape: f32[1,128], index: 6, kind: input, shape index: {}]
  %s7 = inlined_call_operand.hbm [shape: bf16[128,128], index: 7, kind: input, shape index: {}]
  %s8 = inlined_call_operand.vmem [shape: f32[1,128], index: 8, kind: input, shape index: {}]
  %s9 = inlined_call_operand.hbm [shape: f32[32,128], index: 9, kind: output, shape index: {}]
  %s10 = sld [smem:[#allocation0]]
  $region89: #{tpu_custom_call.1} parent=0
    _
  %s12 = ssub.s32 1, %s10
  %s13 = scalar_select 0, %s12, %s10
  $region1: #{tpu_custom_call.1} parent=0
    #allocation2 [shape = 'u8[16384]{0}', space=vmem, size = 0x4000, scoped, tag = 'input window, operand 0']
    #allocation3 [shape = 's32[2]{0}', space=sflag, size = 0x8, scoped, tag = 'scoped memory for tpu_custom_call.1']
    #allocation4 [shape = 's32[2]{0}', space=sflag, size = 0x8, scoped, tag = 'scoped memory for tpu_custom_call.1']
    #allocation5 [shape = 'u8[32768]{0}', space=vmem, size = 0x8000, scoped, tag = 'input window, operand 1, single buffered']
    #allocation6 [shape = 's32[1]{0}', space=sflag, size = 0x4, scoped, tag = 'scoped memory for tpu_custom_call.1']
    #allocation7 [shape = 'u8[32768]{0}', space=vmem, size = 0x8000, scoped, tag = 'input window, operand 3, single buffered']
    #allocation8 [shape = 'u8[32768]{0}', space=vmem, size = 0x8000, scoped, tag = 'input window, operand 5, single buffered']
    #allocation9 [shape = 's32[1]{0}', space=sflag, size = 0x4, scoped, tag = 'scoped memory for tpu_custom_call.1']
    #allocation10 [shape = 'u8[32768]{0}', space=vmem, size = 0x8000, scoped, tag = 'input window, operand 7, single buffered']
    #allocation11 [shape = 'u8[16384]{0}', space=vmem, size = 0x4000, scoped, tag = 'output window, operand 0']
    %14 = vsyncpa [#allocation3], 0
    %s15 = scalar_lea.sflag [#allocation3], 1
    %16 = vsyncpa %s15, 0
    %17 = vsyncpa [#allocation6], 0
    %18 = vsyncpa [#allocation9], 0
    %19 = vsyncpa [#allocation4], 0
    %s20 = scalar_lea.sflag [#allocation4], 1
    %21 = vsyncpa %s20, 0
    loop: start=0, step=1, limit=4
    $region2: #{tpu_custom_call.1} parent=1 // loop_pre_header
      _
    $region3: #{tpu_custom_call.1} parent=1 // loop_header
      %s23 = sphi 0, %s27
      %p24 = scmp.ge.s32.totalorder %s23, 4
      %s33 = sphi 0, %s35
      %s36 = sphi 0, %s33
      %s37 = sphi 0, %s36
      %s53 = sphi 0, %s37
      %s57 = sphi 0, %s57
      %s59 = sphi 0, %s57
      %s60 = sphi 0, %s59
      %s74 = sphi 0, %s60
      %s78 = sphi 0, %s78
      %s80 = sphi 0, %s78
      %s81 = sphi 0, %s80
      %s95 = sphi 0, %s81
      %s99 = sphi 0, %s99
      %s101 = sphi 0, %s99
      %s102 = sphi 0, %s101
      %s116 = sphi 0, %s102
      %s120 = sphi 0, %s120
      %s122 = sphi 0, %s120
      %s123 = sphi 0, %s122
      %s137 = sphi 0, %s123
      %s141 = sphi 0, %s141
      %s143 = sphi 0, %s141
      %s144 = sphi 0, %s143
      %s158 = sphi 0, %s144
      %s162 = sphi 0, %s162
      %s164 = sphi 0, %s162
      %s165 = sphi 0, %s164
      %s179 = sphi 0, %s165
      %s183 = sphi 0, %s183
      %s185 = sphi 0, %s183
      %s186 = sphi 0, %s185
      %s200 = sphi 0, %s186
      %s204 = sphi 0, %s204
      %s206 = sphi 0, %s204
      %s207 = sphi 0, %s206
      %s221 = sphi 0, %s207
      %s227 = sphi 0, %s229
      %s230 = sphi 0, %s227
      %s231 = sphi 0, %s230
      %s247 = sphi 0, %s231
    $region4: #{tpu_custom_call.1} parent=1 // loop_header_branch
      %26 = sbr.rel (%p24) target = $region8
    $region5: #{tpu_custom_call.1} parent=1 // loop_body
      %s28 = ssub.s32 %s23, 1
      %s29 = ssub.s32 %s23, 2
      %s30 = sadd.s32 %s23, 1
      %s31 = ssub.s32 %s23, %s30
      %p32 = scmp.eq.s32.totalorder %s31, 0
      %s34 = sadd.s32 %s33, 1
      %s35 = scalar_select %p32, %s33, %s34
      %p38 = pneg %p32
      %p39 = scmp.eq.s32.totalorder %s23, 1
      %p40 = por %p38, %p39
      %p41 = scmp.ne.s32.totalorder %s33, %s36
      %p42 = scmp.eq.s32.totalorder %s23, 0
      %p43 = por %p41, %p42
      %p44 = scmp.ne.s32.totalorder %s33, %s36
      %p45 = scmp.eq.s32.totalorder %s28, 1
      %p46 = por %p44, %p45
      %p47 = scmp.ne.s32.totalorder %s36, %s37
      %p48 = scmp.eq.s32.totalorder %s28, 0
      %p49 = por %p47, %p48
      %p50 = scmp.ne.s32.totalorder %s36, %s37
      %p51 = scmp.eq.s32.totalorder %s29, 1
      %p52 = por %p50, %p51
      %p54 = scmp.ne.s32.totalorder %s37, %s53
      %p55 = scmp.eq.s32.totalorder %s29, 0
      %p56 = por %p54, %p55
      %s58 = sadd.s32 %s57, 1
      %p61 = scmp.eq.s32.totalorder %s23, 1
      %p62 = scmp.ne.s32.totalorder %s57, %s59
      %p63 = scmp.eq.s32.totalorder %s23, 0
      %p64 = por %p62, %p63
      %p65 = scmp.ne.s32.totalorder %s57, %s59
      %p66 = scmp.eq.s32.totalorder %s28, 1
      %p67 = por %p65, %p66
      %p68 = scmp.ne.s32.totalorder %s59, %s60
      %p69 = scmp.eq.s32.totalorder %s28, 0
      %p70 = por %p68, %p69
      %p71 = scmp.ne.s32.totalorder %s59, %s60
      %p72 = scmp.eq.s32.totalorder %s29, 1
      %p73 = por %p71, %p72
      %p75 = scmp.ne.s32.totalorder %s60, %s74
      %p76 = scmp.eq.s32.totalorder %s29, 0
      %p77 = por %p75, %p76
      %s79 = sadd.s32 %s78, 1
      %p82 = scmp.eq.s32.totalorder %s23, 1
      %p83 = scmp.ne.s32.totalorder %s78, %s80
      %p84 = scmp.eq.s32.totalorder %s23, 0
      %p85 = por %p83, %p84
      %p86 = scmp.ne.s32.totalorder %s78, %s80
      %p87 = scmp.eq.s32.totalorder %s28, 1
      %p88 = por %p86, %p87
      %p89 = scmp.ne.s32.totalorder %s80, %s81
      %p90 = scmp.eq.s32.totalorder %s28, 0
      %p91 = por %p89, %p90
      %p92 = scmp.ne.s32.totalorder %s80, %s81
      %p93 = scmp.eq.s32.totalorder %s29, 1
      %p94 = por %p92, %p93
      %p96 = scmp.ne.s32.totalorder %s81, %s95
      %p97 = scmp.eq.s32.totalorder %s29, 0
      %p98 = por %p96, %p97
      %s100 = sadd.s32 %s99, 1
      %p103 = scmp.eq.s32.totalorder %s23, 1
      %p104 = scmp.ne.s32.totalorder %s99, %s101
      %p105 = scmp.eq.s32.totalorder %s23, 0
      %p106 = por %p104, %p105
      %p107 = scmp.ne.s32.totalorder %s99, %s101
      %p108 = scmp.eq.s32.totalorder %s28, 1
      %p109 = por %p107, %p108
      %p110 = scmp.ne.s32.totalorder %s101, %s102
      %p111 = scmp.eq.s32.totalorder %s28, 0
      %p112 = por %p110, %p111
      %p113 = scmp.ne.s32.totalorder %s101, %s102
      %p114 = scmp.eq.s32.totalorder %s29, 1
      %p115 = por %p113, %p114
      %p117 = scmp.ne.s32.totalorder %s102, %s116
      %p118 = scmp.eq.s32.totalorder %s29, 0
      %p119 = por %p117, %p118
      %s121 = sadd.s32 %s120, 1
      %p124 = scmp.eq.s32.totalorder %s23, 1
      %p125 = scmp.ne.s32.totalorder %s120, %s122
      %p126 = scmp.eq.s32.totalorder %s23, 0
      %p127 = por %p125, %p126
      %p128 = scmp.ne.s32.totalorder %s120, %s122
      %p129 = scmp.eq.s32.totalorder %s28, 1
      %p130 = por %p128, %p129
      %p131 = scmp.ne.s32.totalorder %s122, %s123
      %p132 = scmp.eq.s32.totalorder %s28, 0
      %p133 = por %p131, %p132
      %p134 = scmp.ne.s32.totalorder %s122, %s123
      %p135 = scmp.eq.s32.totalorder %s29, 1
      %p136 = por %p134, %p135
      %p138 = scmp.ne.s32.totalorder %s123, %s137
      %p139 = scmp.eq.s32.totalorder %s29, 0
      %p140 = por %p138, %p139
      %s142 = sadd.s32 %s141, 1
      %p145 = scmp.eq.s32.totalorder %s23, 1
      %p146 = scmp.ne.s32.totalorder %s141, %s143
      %p147 = scmp.eq.s32.totalorder %s23, 0
      %p148 = por %p146, %p147
      %p149 = scmp.ne.s32.totalorder %s141, %s143
      %p150 = scmp.eq.s32.totalorder %s28, 1
      %p151 = por %p149, %p150
      %p152 = scmp.ne.s32.totalorder %s143, %s144
      %p153 = scmp.eq.s32.totalorder %s28, 0
      %p154 = por %p152, %p153
      %p155 = scmp.ne.s32.totalorder %s143, %s144
      %p156 = scmp.eq.s32.totalorder %s29, 1
      %p157 = por %p155, %p156
      %p159 = scmp.ne.s32.totalorder %s144, %s158
      %p160 = scmp.eq.s32.totalorder %s29, 0
      %p161 = por %p159, %p160
      %s163 = sadd.s32 %s162, 1
      %p166 = scmp.eq.s32.totalorder %s23, 1
      %p167 = scmp.ne.s32.totalorder %s162, %s164
      %p168 = scmp.eq.s32.totalorder %s23, 0
      %p169 = por %p167, %p168
      %p170 = scmp.ne.s32.totalorder %s162, %s164
      %p171 = scmp.eq.s32.totalorder %s28, 1
      %p172 = por %p170, %p171
      %p173 = scmp.ne.s32.totalorder %s164, %s165
      %p174 = scmp.eq.s32.totalorder %s28, 0
      %p175 = por %p173, %p174
      %p176 = scmp.ne.s32.totalorder %s164, %s165
      %p177 = scmp.eq.s32.totalorder %s29, 1
      %p178 = por %p176, %p177
      %p180 = scmp.ne.s32.totalorder %s165, %s179
      %p181 = scmp.eq.s32.totalorder %s29, 0
      %p182 = por %p180, %p181
      %s184 = sadd.s32 %s183, 1
      %p187 = scmp.eq.s32.totalorder %s23, 1
      %p188 = scmp.ne.s32.totalorder %s183, %s185
      %p189 = scmp.eq.s32.totalorder %s23, 0
      %p190 = por %p188, %p189
      %p191 = scmp.ne.s32.totalorder %s183, %s185
      %p192 = scmp.eq.s32.totalorder %s28, 1
      %p193 = por %p191, %p192
      %p194 = scmp.ne.s32.totalorder %s185, %s186
      %p195 = scmp.eq.s32.totalorder %s28, 0
      %p196 = por %p194, %p195
      %p197 = scmp.ne.s32.totalorder %s185, %s186
      %p198 = scmp.eq.s32.totalorder %s29, 1
      %p199 = por %p197, %p198
      %p201 = scmp.ne.s32.totalorder %s186, %s200
      %p202 = scmp.eq.s32.totalorder %s29, 0
      %p203 = por %p201, %p202
      %s205 = sadd.s32 %s204, 1
      %p208 = scmp.eq.s32.totalorder %s23, 1
      %p209 = scmp.ne.s32.totalorder %s204, %s206
      %p210 = scmp.eq.s32.totalorder %s23, 0
      %p211 = por %p209, %p210
      %p212 = scmp.ne.s32.totalorder %s204, %s206
      %p213 = scmp.eq.s32.totalorder %s28, 1
      %p214 = por %p212, %p213
      %p215 = scmp.ne.s32.totalorder %s206, %s207
      %p216 = scmp.eq.s32.totalorder %s28, 0
      %p217 = por %p215, %p216
      %p218 = scmp.ne.s32.totalorder %s206, %s207
      %p219 = scmp.eq.s32.totalorder %s29, 1
      %p220 = por %p218, %p219
      %p222 = scmp.ne.s32.totalorder %s207, %s221
      %p223 = scmp.eq.s32.totalorder %s29, 0
      %p224 = por %p222, %p223
      %s225 = ssub.s32 %s23, %s30
      %p226 = scmp.eq.s32.totalorder %s225, 0
      %s228 = sadd.s32 %s227, 1
      %s229 = scalar_select %p226, %s227, %s228
      %p232 = pneg %p226
      %p233 = scmp.eq.s32.totalorder %s23, 1
      %p234 = por %p232, %p233
      %p235 = scmp.ne.s32.totalorder %s227, %s230
      %p236 = scmp.eq.s32.totalorder %s23, 0
      %p237 = por %p235, %p236
      %p238 = scmp.ne.s32.totalorder %s227, %s230
      %p239 = scmp.eq.s32.totalorder %s28, 1
      %p240 = por %p238, %p239
      %p241 = scmp.ne.s32.totalorder %s230, %s231
      %p242 = scmp.eq.s32.totalorder %s28, 0
      %p243 = por %p241, %p242
      %p244 = scmp.ne.s32.totalorder %s230, %s231
      %p245 = scmp.eq.s32.totalorder %s29, 1
      %p246 = por %p244, %p245
      %p248 = scmp.ne.s32.totalorder %s231, %s247
      %p249 = scmp.eq.s32.totalorder %s29, 0
      %p250 = por %p248, %p249
      %p251 = scmp.le.s32.totalorder 1, %s23
      %p252 = scmp.lt.s32.totalorder %s23, 3
      %p253 = pnand %p251, %p252
      %p254 = pneg %p253
      // Predicated region
      $region9: #{tpu_custom_call.1} parent=5 // pred_check
        _
      $region10: #{tpu_custom_call.1} parent=5 // pred_check_branch
        %256 = sbr.rel (%p253) target = $region12
      $region11: #{tpu_custom_call.1} parent=5 // pred_region
        %s257 = ssub.s32 %s23, 1
        // Predicated region
        $region13: #{tpu_custom_call.1} parent=11 // pred_check
          %p258 = pneg %p70
        $region14: #{tpu_custom_call.1} parent=11 // pred_check_branch
          %260 = sbr.rel (%p258) target = $region16
        $region15: #{tpu_custom_call.1} parent=11 // pred_region
          %s262 = ssub.s32 1024, 1024
          %263 = vsyncadd [#allocation6], %s262
          %s264 = sshll.u32 [#allocation5], 4
          %s265 = int_to_ptr.vmem [resolvable:$true] %s264
          %270 = dma.hbm_to_vmem [thread:$0]  %s1, 1024, %s265, [#allocation6], 64, 64, 4
        $region16: #{tpu_custom_call.1} parent=11 // pred_fallthru
          _
        // Predicated region
        $region17: #{tpu_custom_call.1} parent=11 // pred_check
          %p271 = pneg %p91
        $region18: #{tpu_custom_call.1} parent=11 // pred_check_branch
          %273 = sbr.rel (%p271) target = $region20
        $region19: #{tpu_custom_call.1} parent=11 // pred_region
          _
        $region20: #{tpu_custom_call.1} parent=11 // pred_fallthru
          _
        // Predicated region
        $region21: #{tpu_custom_call.1} parent=11 // pred_check
          %p274 = pneg %p112
        $region22: #{tpu_custom_call.1} parent=11 // pred_check_branch
          %276 = sbr.rel (%p274) target = $region24
        $region23: #{tpu_custom_call.1} parent=11 // pred_region
          %s278 = ssub.s32 1024, 1024
          %279 = vsyncadd [#allocation6], %s278
          %s280 = sshll.u32 [#allocation7], 4
          %s281 = int_to_ptr.vmem [resolvable:$true] %s280
          %286 = dma.hbm_to_vmem [thread:$0]  %s3, 1024, %s281, [#allocation6], 64, 64, 4
        $region24: #{tpu_custom_call.1} parent=11 // pred_fallthru
          _
        // Predicated region
        $region25: #{tpu_custom_call.1} parent=11 // pred_check
          %p287 = pneg %p133
        $region26: #{tpu_custom_call.1} parent=11 // pred_check_branch
          %289 = sbr.rel (%p287) target = $region28
        $region27: #{tpu_custom_call.1} parent=11 // pred_region
          _
        $region28: #{tpu_custom_call.1} parent=11 // pred_fallthru
          _
        // Predicated region
        $region29: #{tpu_custom_call.1} parent=11 // pred_check
          %p290 = pneg %p154
        $region30: #{tpu_custom_call.1} parent=11 // pred_check_branch
          %292 = sbr.rel (%p290) target = $region32
        $region31: #{tpu_custom_call.1} parent=11 // pred_region
          %s294 = ssub.s32 1024, 1024
          %295 = vsyncadd [#allocation9], %s294
          %s296 = sshll.u32 [#allocation8], 4
          %s297 = int_to_ptr.vmem [resolvable:$true] %s296
          %302 = dma.hbm_to_vmem [thread:$0]  %s5, 1024, %s297, [#allocation9], 64, 64, 4
        $region32: #{tpu_custom_call.1} parent=11 // pred_fallthru
          _
        // Predicated region
        $region33: #{tpu_custom_call.1} parent=11 // pred_check
          %p303 = pneg %p175
        $region34: #{tpu_custom_call.1} parent=11 // pred_check_branch
          %305 = sbr.rel (%p303) target = $region36
        $region35: #{tpu_custom_call.1} parent=11 // pred_region
          _
        $region36: #{tpu_custom_call.1} parent=11 // pred_fallthru
          _
        // Predicated region
        $region37: #{tpu_custom_call.1} parent=11 // pred_check
          %p306 = pneg %p196
        $region38: #{tpu_custom_call.1} parent=11 // pred_check_branch
          %308 = sbr.rel (%p306) target = $region40
        $region39: #{tpu_custom_call.1} parent=11 // pred_region
          %s310 = ssub.s32 1024, 1024
          %311 = vsyncadd [#allocation9], %s310
          %s312 = sshll.u32 [#allocation10], 4
          %s313 = int_to_ptr.vmem [resolvable:$true] %s312
          %318 = dma.hbm_to_vmem [thread:$0]  %s7, 1024, %s313, [#allocation9], 64, 64, 4
        $region40: #{tpu_custom_call.1} parent=11 // pred_fallthru
          _
        // Predicated region
        $region41: #{tpu_custom_call.1} parent=11 // pred_check
          %p319 = pneg %p217
        $region42: #{tpu_custom_call.1} parent=11 // pred_check_branch
          %321 = sbr.rel (%p319) target = $region44
        $region43: #{tpu_custom_call.1} parent=11 // pred_region
          _
        $region44: #{tpu_custom_call.1} parent=11 // pred_fallthru
          _
      $region12: #{tpu_custom_call.1} parent=5 // pred_fallthru
        _
      %p322 = scmp.lt.s32.totalorder %s23, 2
      // Predicated region
      $region45: #{tpu_custom_call.1} parent=5 // pred_check
        %p323 = pneg %p322
      $region46: #{tpu_custom_call.1} parent=5 // pred_check_branch
        %325 = sbr.rel (%p323) target = $region48
      $region47: #{tpu_custom_call.1} parent=5 // pred_region
        // Predicated region
        $region49: #{tpu_custom_call.1} parent=47 // pred_check
          %p326 = pneg %p43
        $region50: #{tpu_custom_call.1} parent=47 // pred_check_branch
          %328 = sbr.rel (%p326) target = $region52
        $region51: #{tpu_custom_call.1} parent=47 // pred_region
          %s329 = sand.u32 %s33, 1
          %s330 = scalar_lea.sflag [#allocation3], %s329
          %s331 = sand.u32 %s33, 1
          %s332 = smul.addr %s331, 16
          %s333 = scalar_lea.vmem [#allocation2], %s332
          %s334 = smul.u32 2, %s23
          %s336 = ssub.s32 256, 256
          %337 = vsyncadd %s330, %s336
          %s338 = smul.addr %s334, 128
          %s339 = scalar_lea.hbm %s0, %s338
          %s340 = sshll.u32 %s333, 4
          %s341 = int_to_ptr.vmem [resolvable:$true] %s340
          %346 = dma.hbm_to_vmem [thread:$0]  %s339, 256, %s341, %s330, 128, 128, 8
        $region52: #{tpu_custom_call.1} parent=47 // pred_fallthru
          _
      $region48: #{tpu_custom_call.1} parent=5 // pred_fallthru
        _
      %p347 = scmp.le.s32.totalorder 1, %s23
      %p348 = scmp.lt.s32.totalorder %s23, 3
      %p349 = pnand %p347, %p348
      %p350 = pneg %p349
      // Predicated region
      $region53: #{tpu_custom_call.1} parent=5 // pred_check
        _
      $region54: #{tpu_custom_call.1} parent=5 // pred_check_branch
        %352 = sbr.rel (%p349) target = $region56
      $region55: #{tpu_custom_call.1} parent=5 // pred_region
        %s353 = ssub.s32 %s23, 1
        %s354 = sand.u32 %s36, 1
        %s355 = scalar_lea.sflag [#allocation3], %s354
        %s356 = sand.u32 %s36, 1
        %s357 = smul.addr %s356, 16
        %s358 = scalar_lea.vmem [#allocation2], %s357
        // Predicated region
        $region57: #{tpu_custom_call.1} parent=55 // pred_check
          %p359 = pneg %p49
        $region58: #{tpu_custom_call.1} parent=55 // pred_check_branch
          %361 = sbr.rel (%p359) target = $region60
        $region59: #{tpu_custom_call.1} parent=55 // pred_region
          %362 = dma.done %s355, 256
        $region60: #{tpu_custom_call.1} parent=55 // pred_fallthru
          _
        // Predicated region
        $region61: #{tpu_custom_call.1} parent=55 // pred_check
          %p363 = pneg %p70
        $region62: #{tpu_custom_call.1} parent=55 // pred_check_branch
          %365 = sbr.rel (%p363) target = $region64
        $region63: #{tpu_custom_call.1} parent=55 // pred_region
          %366 = dma.done [#allocation6], 1024
        $region64: #{tpu_custom_call.1} parent=55 // pred_fallthru
          _
        // Predicated region
        $region65: #{tpu_custom_call.1} parent=55 // pred_check
          %p367 = pneg %p112
        $region66: #{tpu_custom_call.1} parent=55 // pred_check_branch
          %369 = sbr.rel (%p367) target = $region68
        $region67: #{tpu_custom_call.1} parent=55 // pred_region
          %370 = dma.done [#allocation6], 1024
        $region68: #{tpu_custom_call.1} parent=55 // pred_fallthru
          _
        // Predicated region
        $region69: #{tpu_custom_call.1} parent=55 // pred_check
          %p371 = pneg %p154
        $region70: #{tpu_custom_call.1} parent=55 // pred_check_branch
          %373 = sbr.rel (%p371) target = $region72
        $region71: #{tpu_custom_call.1} parent=55 // pred_region
          %374 = dma.done [#allocation9], 1024
        $region72: #{tpu_custom_call.1} parent=55 // pred_fallthru
          _
        // Predicated region
        $region73: #{tpu_custom_call.1} parent=55 // pred_check
          %p375 = pneg %p196
        $region74: #{tpu_custom_call.1} parent=55 // pred_check_branch
          %377 = sbr.rel (%p375) target = $region76
        $region75: #{tpu_custom_call.1} parent=55 // pred_region
          %378 = dma.done [#allocation9], 1024
        $region76: #{tpu_custom_call.1} parent=55 // pred_fallthru
          _
        %s379 = sand.u32 %s36, 1
        %s380 = scalar_lea.sflag [#allocation3], %s379
        %s381 = sand.u32 %s36, 1
        %s382 = smul.addr %s381, 16
        %s383 = scalar_lea.vmem [#allocation2], %s382
        %p384 = pneg %p49
        %p385 = pneg %p46
        %p386 = pneg %p70
        %p387 = pneg %p67
        %p388 = pneg %p91
        %p389 = pneg %p88
        %p390 = pneg %p112
        %p391 = pneg %p109
        %p392 = pneg %p133
        %p393 = pneg %p130
        %p394 = pneg %p154
        %p395 = pneg %p151
        %p396 = pneg %p175
        %p397 = pneg %p172
        %p398 = pneg %p196
        %p399 = pneg %p193
        %p400 = pneg %p217
        %p401 = pneg %p214
        %p402 = pneg %p243
        %p403 = pneg %p240
        %s404 = sand.u32 %s230, 1
        %s405 = scalar_lea.sflag [#allocation4], %s404
        %s406 = sand.u32 %s230, 1
        %s407 = smul.addr %s406, 16
        %s408 = scalar_lea.vmem [#allocation11], %s407
        %s409 = smul.u32 2, %s28
        %s410 = smul.u32 2, %s28
        %v412 = vld [vmem:[%s358] sm:$0xff]
        %v413 = vld [vmem:[%s358 + $0x8] sm:$0xff]
        %v414 = vlaneseq
        %v415 = vand.u32 %v414, 127
        %416 = vset.pattern.permute.xlu0 0
        %417 = vperm.xlu0 %416, %v412
        %v418 = vpop.permute.xlu0 %417
        %419 = vset.pattern.permute.xlu0 0
        %420 = vperm.xlu0 %419, %v413
        %v421 = vpop.permute.xlu0 %420
        %vm422 = vcmp.eq.s32.totalorder %v415, %v418
        %vm423 = vcmp.eq.s32.totalorder %v415, %v421
        %v424 = vsel %vm422, 1, 0
        %v425 = vsel %vm423, 1, 0
        %v426 = vcvt.s32.f32 %v424
        %v427 = vcvt.s32.f32 %v425
        %v428 = vadd.f32 %v426, 0.0
        %v429 = vadd.f32 %v427, 0.0
        %430 = vset.pattern.permute.xlu0 1
        %431 = vperm.xlu0 %430, %v412
        %v432 = vpop.permute.xlu0 %431
        %433 = vset.pattern.permute.xlu0 1
        %434 = vperm.xlu0 %433, %v413
        %v435 = vpop.permute.xlu0 %434
        %vm436 = vcmp.eq.s32.totalorder %v415, %v432
        %vm437 = vcmp.eq.s32.totalorder %v415, %v435
        %v438 = vsel %vm436, 1, 0
        %v439 = vsel %vm437, 1, 0
        %v440 = vcvt.s32.f32 %v438
        %v441 = vcvt.s32.f32 %v439
        %v442 = vadd.f32 %v428, %v440
        %v443 = vadd.f32 %v429, %v441
        %444 = vset.pattern.permute.xlu0 2
        %445 = vperm.xlu0 %444, %v412
        %v446 = vpop.permute.xlu0 %445
        %447 = vset.pattern.permute.xlu0 2
        %448 = vperm.xlu0 %447, %v413
        %v449 = vpop.permute.xlu0 %448
        %vm450 = vcmp.eq.s32.totalorder %v415, %v446
        %vm451 = vcmp.eq.s32.totalorder %v415, %v449
        %v452 = vsel %vm450, 1, 0
        %v453 = vsel %vm451, 1, 0
        %v454 = vcvt.s32.f32 %v452
        %v455 = vcvt.s32.f32 %v453
        %v456 = vadd.f32 %v442, %v454
        %v457 = vadd.f32 %v443, %v455
        %458 = vset.pattern.permute.xlu0 3
        %459 = vperm.xlu0 %458, %v412
        %v460 = vpop.permute.xlu0 %459
        %461 = vset.pattern.permute.xlu0 3
        %462 = vperm.xlu0 %461, %v413
        %v463 = vpop.permute.xlu0 %462
        %vm464 = vcmp.eq.s32.totalorder %v415, %v460
        %vm465 = vcmp.eq.s32.totalorder %v415, %v463
        %v466 = vsel %vm464, 1, 0
        %v467 = vsel %vm465, 1, 0
        %v468 = vcvt.s32.f32 %v466
        %v469 = vcvt.s32.f32 %v467
        %v470 = vadd.f32 %v456, %v468
        %v471 = vadd.f32 %v457, %v469
        %472 = vset.pattern.permute.xlu0 4
        %473 = vperm.xlu0 %472, %v412
        %v474 = vpop.permute.xlu0 %473
        %475 = vset.pattern.permute.xlu0 4
        %476 = vperm.xlu0 %475, %v413
        %v477 = vpop.permute.xlu0 %476
        %vm478 = vcmp.eq.s32.totalorder %v415, %v474
        %vm479 = vcmp.eq.s32.totalorder %v415, %v477
        %v480 = vsel %vm478, 1, 0
        %v481 = vsel %vm479, 1, 0
        %v482 = vcvt.s32.f32 %v480
        %v483 = vcvt.s32.f32 %v481
        %v484 = vadd.f32 %v470, %v482
        %v485 = vadd.f32 %v471, %v483
        %486 = vset.pattern.permute.xlu0 5
        %487 = vperm.xlu0 %486, %v412
        %v488 = vpop.permute.xlu0 %487
        %489 = vset.pattern.permute.xlu0 5
        %490 = vperm.xlu0 %489, %v413
        %v491 = vpop.permute.xlu0 %490
        %vm492 = vcmp.eq.s32.totalorder %v415, %v488
        %vm493 = vcmp.eq.s32.totalorder %v415, %v491
        %v494 = vsel %vm492, 1, 0
        %v495 = vsel %vm493, 1, 0
        %v496 = vcvt.s32.f32 %v494
        %v497 = vcvt.s32.f32 %v495
        %v498 = vadd.f32 %v484, %v496
        %v499 = vadd.f32 %v485, %v497
        %v500 = vpack.c.bf16 %v499, %v498
        %v501 = vld [vmem:[#allocation5] sm:$0xf]
        %v502 = vld [vmem:[#allocation5 + $0x4] sm:$0xf]
        %v503 = vld [vmem:[#allocation5 + $0x8] sm:$0xf]
        %v504 = vld [vmem:[#allocation5 + $0xc] sm:$0xf]
        %v505 = vld [vmem:[#allocation5 + $0x10] sm:$0xf]
        %v506 = vld [vmem:[#allocation5 + $0x14] sm:$0xf]
        %v507 = vld [vmem:[#allocation5 + $0x18] sm:$0xf]
        %v508 = vld [vmem:[#allocation5 + $0x1c] sm:$0xf]
        %v509 = vld [vmem:[#allocation5 + $0x20] sm:$0xf]
        %v510 = vld [vmem:[#allocation5 + $0x24] sm:$0xf]
        %v511 = vld [vmem:[#allocation5 + $0x28] sm:$0xf]
        %v512 = vld [vmem:[#allocation5 + $0x2c] sm:$0xf]
        %v513 = vld [vmem:[#allocation5 + $0x30] sm:$0xf]
        %v514 = vld [vmem:[#allocation5 + $0x34] sm:$0xf]
        %v515 = vld [vmem:[#allocation5 + $0x38] sm:$0xf]
        %v516 = vld [vmem:[#allocation5 + $0x3c] sm:$0xf]
        %v517 = vld [vmem:[%s2] sm:$0x1]
        %v519 = vlaneseq
        %v520 = vshrl.u32 %v519, 7
        %v521 = vsub.s32 0, %v520
        %v522 = vrot.slane %v517, %v521
        %v540 = vunpack.c.l.b16 %v501
        %v541 = vunpack.c.l.b16 %v502
        %v542 = vunpack.c.l.b16 %v503
        %v543 = vunpack.c.l.b16 %v504
        %v544 = vunpack.c.l.b16 %v505
        %v545 = vunpack.c.l.b16 %v506
        %v546 = vunpack.c.l.b16 %v507
        %v547 = vunpack.c.l.b16 %v508
        %v548 = vunpack.c.l.b16 %v509
        %v549 = vunpack.c.l.b16 %v510
        %v550 = vunpack.c.l.b16 %v511
        %v551 = vunpack.c.l.b16 %v512
        %v552 = vunpack.c.l.b16 %v513
        %v553 = vunpack.c.l.b16 %v514
        %v554 = vunpack.c.l.b16 %v515
        %v555 = vunpack.c.l.b16 %v516
        %v556 = vpack.c.b16 %v541, %v540
        %v557 = vpack.c.b16 %v543, %v542
        %v558 = vpack.c.b16 %v545, %v544
        %v559 = vpack.c.b16 %v547, %v546
        %v560 = vpack.c.b16 %v549, %v548
        %v561 = vpack.c.b16 %v551, %v550
        %v562 = vpack.c.b16 %v553, %v552
        %v563 = vpack.c.b16 %v555, %v554
        %572 = vmatprep.subr.bf16.mxu0 0
        %573 = vmatpush1.bf16.msra.mxu0 %v563
        %574 = vmatprep.subr.bf16.mxu0 0
        %575 = vmatpush1.bf16.msra.mxu0 %v562
        %576 = vmatprep.subr.bf16.mxu0 0
        %577 = vmatpush1.bf16.msra.mxu0 %v561
        %578 = vmatprep.subr.bf16.mxu0 0
        %579 = vmatpush1.bf16.msra.mxu0 %v560
        %580 = vmatprep.subr.bf16.mxu0 0
        %581 = vmatpush1.bf16.msra.mxu0 %v559
        %582 = vmatprep.subr.bf16.mxu0 0
        %583 = vmatpush1.bf16.msra.mxu0 %v558
        %584 = vmatprep.subr.bf16.mxu0 0
        %585 = vmatpush1.bf16.msra.mxu0 %v557
        %586 = vmatprep.subr.bf16.mxu0 0
        %587 = vmatpush1.bf16.msra.mxu0 %v556
        %588 = vmatprep.subr.bf16.mxu0 0
        %589 = vmatpush2.bf16.msra.mxu0 0
        %590 = vmatprep.subr.bf16.mxu0 0
        %591 = vmatpush2.bf16.msra.mxu0 0
        %592 = vmatprep.subr.bf16.mxu0 0
        %593 = vmatpush2.bf16.msra.mxu0 0
        %594 = vmatprep.subr.bf16.mxu0 0
        %595 = vmatpush2.bf16.msra.mxu0 0
        %596 = vmatprep.subr.bf16.mxu0 0
        %597 = vmatpush2.bf16.msra.mxu0 0
        %598 = vmatprep.subr.bf16.mxu0 0
        %599 = vmatpush2.bf16.msra.mxu0 0
        %600 = vmatprep.subr.bf16.mxu0 0
        %601 = vmatpush2.bf16.msra.mxu0 0
        %602 = vmatprep.subr.bf16.mxu0 0
        %603 = vmatpush2.bf16.msra.mxu0 0
        %604 = vmatprep.mubr.bf16.mxu0 0
        %605 = vmatmul.mubr.bf16.gmra.mxu0 %v500
        %v606 = vpop.f32.mrf.mxu0
        %v607 = vadd.f32 %v522, %v606
        %v608 = vpop.f32.mrf.mxu0
        %v609 = vpop.f32.mrf.mxu0
        %v610 = vadd.f32 %v522, %v609
        %v611 = vpop.f32.mrf.mxu0
        %612 = vdwg.mxu0
        %v613 = vmax.f32 %v607, 0.0
        %v614 = vmax.f32 %v610, 0.0
        %v615 = vpack.c.bf16 %v614, %v613
        %v616 = vld [vmem:[#allocation7] sm:$0xf]
        %v617 = vld [vmem:[#allocation7 + $0x4] sm:$0xf]
        %v618 = vld [vmem:[#allocation7 + $0x8] sm:$0xf]
        %v619 = vld [vmem:[#allocation7 + $0xc] sm:$0xf]
        %v620 = vld [vmem:[#allocation7 + $0x10] sm:$0xf]
        %v621 = vld [vmem:[#allocation7 + $0x14] sm:$0xf]
        %v622 = vld [vmem:[#allocation7 + $0x18] sm:$0xf]
        %v623 = vld [vmem:[#allocation7 + $0x1c] sm:$0xf]
        %v624 = vld [vmem:[#allocation7 + $0x20] sm:$0xf]
        %v625 = vld [vmem:[#allocation7 + $0x24] sm:$0xf]
        %v626 = vld [vmem:[#allocation7 + $0x28] sm:$0xf]
        %v627 = vld [vmem:[#allocation7 + $0x2c] sm:$0xf]
        %v628 = vld [vmem:[#allocation7 + $0x30] sm:$0xf]
        %v629 = vld [vmem:[#allocation7 + $0x34] sm:$0xf]
        %v630 = vld [vmem:[#allocation7 + $0x38] sm:$0xf]
        %v631 = vld [vmem:[#allocation7 + $0x3c] sm:$0xf]
        %v632 = vld [vmem:[%s4] sm:$0x1]
        %v634 = vlaneseq
        %v635 = vshrl.u32 %v634, 7
        %v636 = vsub.s32 0, %v635
        %v637 = vrot.slane %v632, %v636
        %v655 = vunpack.c.l.b16 %v616
        %v656 = vunpack.c.l.b16 %v617
        %v657 = vunpack.c.l.b16 %v618
        %v658 = vunpack.c.l.b16 %v619
        %v659 = vunpack.c.l.b16 %v620
        %v660 = vunpack.c.l.b16 %v621
        %v661 = vunpack.c.l.b16 %v622
        %v662 = vunpack.c.l.b16 %v623
        %v663 = vunpack.c.l.b16 %v624
        %v664 = vunpack.c.l.b16 %v625
        %v665 = vunpack.c.l.b16 %v626
        %v666 = vunpack.c.l.b16 %v627
        %v667 = vunpack.c.l.b16 %v628
        %v668 = vunpack.c.l.b16 %v629
        %v669 = vunpack.c.l.b16 %v630
        %v670 = vunpack.c.l.b16 %v631
        %v671 = vpack.c.b16 %v656, %v655
        %v672 = vpack.c.b16 %v658, %v657
        %v673 = vpack.c.b16 %v660, %v659
        %v674 = vpack.c.b16 %v662, %v661
        %v675 = vpack.c.b16 %v664, %v663
        %v676 = vpack.c.b16 %v666, %v665
        %v677 = vpack.c.b16 %v668, %v667
        %v678 = vpack.c.b16 %v670, %v669
        %687 = vmatprep.subr.bf16.mxu0 0
        %688 = vmatpush1.bf16.msra.mxu0 %v678
        %689 = vmatprep.subr.bf16.mxu0 0
        %690 = vmatpush1.bf16.msra.mxu0 %v677
        %691 = vmatprep.subr.bf16.mxu0 0
        %692 = vmatpush1.bf16.msra.mxu0 %v676
        %693 = vmatprep.subr.bf16.mxu0 0
        %694 = vmatpush1.bf16.msra.mxu0 %v675
        %695 = vmatprep.subr.bf16.mxu0 0
        %696 = vmatpush1.bf16.msra.mxu0 %v674
        %697 = vmatprep.subr.bf16.mxu0 0
        %698 = vmatpush1.bf16.msra.mxu0 %v673
        %699 = vmatprep.subr.bf16.mxu0 0
        %700 = vmatpush1.bf16.msra.mxu0 %v672
        %701 = vmatprep.subr.bf16.mxu0 0
        %702 = vmatpush1.bf16.msra.mxu0 %v671
        %703 = vmatprep.subr.bf16.mxu0 0
        %704 = vmatpush2.bf16.msra.mxu0 0
        %705 = vmatprep.subr.bf16.mxu0 0
        %706 = vmatpush2.bf16.msra.mxu0 0
        %707 = vmatprep.subr.bf16.mxu0 0
        %708 = vmatpush2.bf16.msra.mxu0 0
        %709 = vmatprep.subr.bf16.mxu0 0
        %710 = vmatpush2.bf16.msra.mxu0 0
        %711 = vmatprep.subr.bf16.mxu0 0
        %712 = vmatpush2.bf16.msra.mxu0 0
        %713 = vmatprep.subr.bf16.mxu0 0
        %714 = vmatpush2.bf16.msra.mxu0 0
        %715 = vmatprep.subr.bf16.mxu0 0
        %716 = vmatpush2.bf16.msra.mxu0 0
        %717 = vmatprep.subr.bf16.mxu0 0
        %718 = vmatpush2.bf16.msra.mxu0 0
        %719 = vmatprep.mubr.bf16.mxu0 0
        %720 = vmatmul.mubr.bf16.gmra.mxu0 %v615
        %v721 = vpop.f32.mrf.mxu0
        %v722 = vadd.f32 %v637, %v721
        %v723 = vpop.f32.mrf.mxu0
        %v724 = vpop.f32.mrf.mxu0
        %v725 = vadd.f32 %v637, %v724
        %v726 = vpop.f32.mrf.mxu0
        %727 = vdwg.mxu0
        %v728 = vmax.f32 %v722, 0.0
        %v729 = vmax.f32 %v725, 0.0
        %v730 = vpack.c.bf16 %v729, %v728
        %v731 = vld [vmem:[#allocation8] sm:$0xf]
        %v732 = vld [vmem:[#allocation8 + $0x4] sm:$0xf]
        %v733 = vld [vmem:[#allocation8 + $0x8] sm:$0xf]
        %v734 = vld [vmem:[#allocation8 + $0xc] sm:$0xf]
        %v735 = vld [vmem:[#allocation8 + $0x10] sm:$0xf]
        %v736 = vld [vmem:[#allocation8 + $0x14] sm:$0xf]
        %v737 = vld [vmem:[#allocation8 + $0x18] sm:$0xf]
        %v738 = vld [vmem:[#allocation8 + $0x1c] sm:$0xf]
        %v739 = vld [vmem:[#allocation8 + $0x20] sm:$0xf]
        %v740 = vld [vmem:[#allocation8 + $0x24] sm:$0xf]
        %v741 = vld [vmem:[#allocation8 + $0x28] sm:$0xf]
        %v742 = vld [vmem:[#allocation8 + $0x2c] sm:$0xf]
        %v743 = vld [vmem:[#allocation8 + $0x30] sm:$0xf]
        %v744 = vld [vmem:[#allocation8 + $0x34] sm:$0xf]
        %v745 = vld [vmem:[#allocation8 + $0x38] sm:$0xf]
        %v746 = vld [vmem:[#allocation8 + $0x3c] sm:$0xf]
        %v747 = vld [vmem:[%s6] sm:$0x1]
        %v749 = vlaneseq
        %v750 = vshrl.u32 %v749, 7
        %v751 = vsub.s32 0, %v750
        %v752 = vrot.slane %v747, %v751
        %v770 = vunpack.c.l.b16 %v731
        %v771 = vunpack.c.l.b16 %v732
        %v772 = vunpack.c.l.b16 %v733
        %v773 = vunpack.c.l.b16 %v734
        %v774 = vunpack.c.l.b16 %v735
        %v775 = vunpack.c.l.b16 %v736
        %v776 = vunpack.c.l.b16 %v737
        %v777 = vunpack.c.l.b16 %v738
        %v778 = vunpack.c.l.b16 %v739
        %v779 = vunpack.c.l.b16 %v740
        %v780 = vunpack.c.l.b16 %v741
        %v781 = vunpack.c.l.b16 %v742
        %v782 = vunpack.c.l.b16 %v743
        %v783 = vunpack.c.l.b16 %v744
        %v784 = vunpack.c.l.b16 %v745
        %v785 = vunpack.c.l.b16 %v746
        %v786 = vpack.c.b16 %v771, %v770
        %v787 = vpack.c.b16 %v773, %v772
        %v788 = vpack.c.b16 %v775, %v774
        %v789 = vpack.c.b16 %v777, %v776
        %v790 = vpack.c.b16 %v779, %v778
        %v791 = vpack.c.b16 %v781, %v780
        %v792 = vpack.c.b16 %v783, %v782
        %v793 = vpack.c.b16 %v785, %v784
        %802 = vmatprep.subr.bf16.mxu0 0
        %803 = vmatpush1.bf16.msra.mxu0 %v793
        %804 = vmatprep.subr.bf16.mxu0 0
        %805 = vmatpush1.bf16.msra.mxu0 %v792
        %806 = vmatprep.subr.bf16.mxu0 0
        %807 = vmatpush1.bf16.msra.mxu0 %v791
        %808 = vmatprep.subr.bf16.mxu0 0
        %809 = vmatpush1.bf16.msra.mxu0 %v790
        %810 = vmatprep.subr.bf16.mxu0 0
        %811 = vmatpush1.bf16.msra.mxu0 %v789
        %812 = vmatprep.subr.bf16.mxu0 0
        %813 = vmatpush1.bf16.msra.mxu0 %v788
        %814 = vmatprep.subr.bf16.mxu0 0
        %815 = vmatpush1.bf16.msra.mxu0 %v787
        %816 = vmatprep.subr.bf16.mxu0 0
        %817 = vmatpush1.bf16.msra.mxu0 %v786
        %818 = vmatprep.subr.bf16.mxu0 0
        %819 = vmatpush2.bf16.msra.mxu0 0
        %820 = vmatprep.subr.bf16.mxu0 0
        %821 = vmatpush2.bf16.msra.mxu0 0
        %822 = vmatprep.subr.bf16.mxu0 0
        %823 = vmatpush2.bf16.msra.mxu0 0
        %824 = vmatprep.subr.bf16.mxu0 0
        %825 = vmatpush2.bf16.msra.mxu0 0
        %826 = vmatprep.subr.bf16.mxu0 0
        %827 = vmatpush2.bf16.msra.mxu0 0
        %828 = vmatprep.subr.bf16.mxu0 0
        %829 = vmatpush2.bf16.msra.mxu0 0
        %830 = vmatprep.subr.bf16.mxu0 0
        %831 = vmatpush2.bf16.msra.mxu0 0
        %832 = vmatprep.subr.bf16.mxu0 0
        %833 = vmatpush2.bf16.msra.mxu0 0
        %834 = vmatprep.mubr.bf16.mxu0 0
        %835 = vmatmul.mubr.bf16.gmra.mxu0 %v730
        %v836 = vpop.f32.mrf.mxu0
        %v837 = vadd.f32 %v752, %v836
        %v838 = vpop.f32.mrf.mxu0
        %v839 = vpop.f32.mrf.mxu0
        %v840 = vadd.f32 %v752, %v839
        %v841 = vpop.f32.mrf.mxu0
        %842 = vdwg.mxu0
        %v843 = vmax.f32 %v837, 0.0
        %v844 = vmax.f32 %v840, 0.0
        %v845 = vpack.c.bf16 %v844, %v843
        %v846 = vld [vmem:[#allocation10] sm:$0xf]
        %v847 = vld [vmem:[#allocation10 + $0x4] sm:$0xf]
        %v848 = vld [vmem:[#allocation10 + $0x8] sm:$0xf]
        %v849 = vld [vmem:[#allocation10 + $0xc] sm:$0xf]
        %v850 = vld [vmem:[#allocation10 + $0x10] sm:$0xf]
        %v851 = vld [vmem:[#allocation10 + $0x14] sm:$0xf]
        %v852 = vld [vmem:[#allocation10 + $0x18] sm:$0xf]
        %v853 = vld [vmem:[#allocation10 + $0x1c] sm:$0xf]
        %v854 = vld [vmem:[#allocation10 + $0x20] sm:$0xf]
        %v855 = vld [vmem:[#allocation10 + $0x24] sm:$0xf]
        %v856 = vld [vmem:[#allocation10 + $0x28] sm:$0xf]
        %v857 = vld [vmem:[#allocation10 + $0x2c] sm:$0xf]
        %v858 = vld [vmem:[#allocation10 + $0x30] sm:$0xf]
        %v859 = vld [vmem:[#allocation10 + $0x34] sm:$0xf]
        %v860 = vld [vmem:[#allocation10 + $0x38] sm:$0xf]
        %v861 = vld [vmem:[#allocation10 + $0x3c] sm:$0xf]
        %v862 = vld [vmem:[%s8] sm:$0x1]
        %v864 = vlaneseq
        %v865 = vshrl.u32 %v864, 7
        %v866 = vsub.s32 0, %v865
        %v867 = vrot.slane %v862, %v866
        %v885 = vunpack.c.l.b16 %v846
        %v886 = vunpack.c.l.b16 %v847
        %v887 = vunpack.c.l.b16 %v848
        %v888 = vunpack.c.l.b16 %v849
        %v889 = vunpack.c.l.b16 %v850
        %v890 = vunpack.c.l.b16 %v851
        %v891 = vunpack.c.l.b16 %v852
        %v892 = vunpack.c.l.b16 %v853
        %v893 = vunpack.c.l.b16 %v854
        %v894 = vunpack.c.l.b16 %v855
        %v895 = vunpack.c.l.b16 %v856
        %v896 = vunpack.c.l.b16 %v857
        %v897 = vunpack.c.l.b16 %v858
        %v898 = vunpack.c.l.b16 %v859
        %v899 = vunpack.c.l.b16 %v860
        %v900 = vunpack.c.l.b16 %v861
        %v901 = vpack.c.b16 %v886, %v885
        %v902 = vpack.c.b16 %v888, %v887
        %v903 = vpack.c.b16 %v890, %v889
        %v904 = vpack.c.b16 %v892, %v891
        %v905 = vpack.c.b16 %v894, %v893
        %v906 = vpack.c.b16 %v896, %v895
        %v907 = vpack.c.b16 %v898, %v897
        %v908 = vpack.c.b16 %v900, %v899
        %917 = vmatprep.subr.bf16.mxu0 0
        %918 = vmatpush1.bf16.msra.mxu0 %v908
        %919 = vmatprep.subr.bf16.mxu0 0
        %920 = vmatpush1.bf16.msra.mxu0 %v907
        %921 = vmatprep.subr.bf16.mxu0 0
        %922 = vmatpush1.bf16.msra.mxu0 %v906
        %923 = vmatprep.subr.bf16.mxu0 0
        %924 = vmatpush1.bf16.msra.mxu0 %v905
        %925 = vmatprep.subr.bf16.mxu0 0
        %926 = vmatpush1.bf16.msra.mxu0 %v904
        %927 = vmatprep.subr.bf16.mxu0 0
        %928 = vmatpush1.bf16.msra.mxu0 %v903
        %929 = vmatprep.subr.bf16.mxu0 0
        %930 = vmatpush1.bf16.msra.mxu0 %v902
        %931 = vmatprep.subr.bf16.mxu0 0
        %932 = vmatpush1.bf16.msra.mxu0 %v901
        %933 = vmatprep.subr.bf16.mxu0 0
        %934 = vmatpush2.bf16.msra.mxu0 0
        %935 = vmatprep.subr.bf16.mxu0 0
        %936 = vmatpush2.bf16.msra.mxu0 0
        %937 = vmatprep.subr.bf16.mxu0 0
        %938 = vmatpush2.bf16.msra.mxu0 0
        %939 = vmatprep.subr.bf16.mxu0 0
        %940 = vmatpush2.bf16.msra.mxu0 0
        %941 = vmatprep.subr.bf16.mxu0 0
        %942 = vmatpush2.bf16.msra.mxu0 0
        %943 = vmatprep.subr.bf16.mxu0 0
        %944 = vmatpush2.bf16.msra.mxu0 0
        %945 = vmatprep.subr.bf16.mxu0 0
        %946 = vmatpush2.bf16.msra.mxu0 0
        %947 = vmatprep.subr.bf16.mxu0 0
        %948 = vmatpush2.bf16.msra.mxu0 0
        %949 = vmatprep.mubr.bf16.mxu0 0
        %950 = vmatmul.mubr.bf16.gmra.mxu0 %v845
        %v951 = vpop.f32.mrf.mxu0
        %v952 = vadd.f32 %v867, %v951
        %v953 = vpop.f32.mrf.mxu0
        %v954 = vpop.f32.mrf.mxu0
        %v955 = vadd.f32 %v867, %v954
        %v956 = vpop.f32.mrf.mxu0
        %957 = vdwg.mxu0
        %958 = vmax.xlane.f32.xlu0 %v952
        %v959 = vpop.xlane.xlu0 %958
        %960 = vmax.xlane.f32.xlu0 %v955
        %v961 = vpop.xlane.xlu0 %960
        %v962 = vsub.f32 %v952, %v959
        %v963 = vsub.f32 %v955, %v961
        %v964 = vmul.f32 %v962, 1.442695
        %v965 = vpow.pop %v964
        %v966 = vmul.f32 %v963, 1.442695
        %v967 = vpow.pop %v966
        %968 = vadd.xlane.f32.xlu0 %v965
        %v969 = vpop.xlane.xlu0 %968
        %970 = vadd.xlane.f32.xlu0 %v967
        %v971 = vpop.xlane.xlu0 %970
        %v972 = vlog2.pop %v969
        %v973 = vmul.f32 %v972, 0.6931472
        %v974 = vlog2.pop %v971
        %v975 = vmul.f32 %v974, 0.6931472
        %v976 = vsub.f32 %v962, %v973
        %v977 = vsub.f32 %v963, %v975
        %978 = vst [vmem:[%s408] sm:$0xff] %v976
        %979 = vst [vmem:[%s408 + $0x8] sm:$0xff] %v977
        %s980 = sand.u32 %s230, 1
        %s981 = scalar_lea.sflag [#allocation4], %s980
        %s982 = sand.u32 %s230, 1
        %s983 = smul.addr %s982, 16
        %s984 = scalar_lea.vmem [#allocation11], %s983
        // Predicated region
        $region77: #{tpu_custom_call.1} parent=55 // pred_check
          %p985 = pneg %p240
        $region78: #{tpu_custom_call.1} parent=55 // pred_check_branch
          %987 = sbr.rel (%p985) target = $region80
        $region79: #{tpu_custom_call.1} parent=55 // pred_region
          %s988 = smul.u32 2, %s28
          %s990 = ssub.s32 256, 256
          %991 = vsyncadd %s981, %s990
          %s992 = smul.addr %s988, 128
          %s993 = scalar_lea.hbm %s9, %s992
          %s994 = sshll.u32 %s984, 4
          %s995 = int_to_ptr.vmem [resolvable:$true] %s994
          %1000 = dma.vmem_to_hbm [thread:$0]  %s995, 256, %s993, %s981, 128, 128, 8
        $region80: #{tpu_custom_call.1} parent=55 // pred_fallthru
          _
      $region56: #{tpu_custom_call.1} parent=5 // pred_fallthru
        _
      %p1001 = scmp.le.s32.totalorder 2, %s23
      // Predicated region
      $region81: #{tpu_custom_call.1} parent=5 // pred_check
        %p1002 = pneg %p1001
      $region82: #{tpu_custom_call.1} parent=5 // pred_check_branch
        %1004 = sbr.rel (%p1002) target = $region84
      $region83: #{tpu_custom_call.1} parent=5 // pred_region
        %s1005 = ssub.s32 %s23, 2
        // Predicated region
        $region85: #{tpu_custom_call.1} parent=83 // pred_check
          %p1006 = pneg %p246
        $region86: #{tpu_custom_call.1} parent=83 // pred_check_branch
          %1008 = sbr.rel (%p1006) target = $region88
        $region87: #{tpu_custom_call.1} parent=83 // pred_region
          %s1009 = sand.u32 %s231, 1
          %s1010 = scalar_lea.sflag [#allocation4], %s1009
          %s1011 = sand.u32 %s231, 1
          %s1012 = smul.addr %s1011, 16
          %s1013 = scalar_lea.vmem [#allocation11], %s1012
          %1014 = dma.done %s1010, 256
        $region88: #{tpu_custom_call.1} parent=83 // pred_fallthru
          _
      $region84: #{tpu_custom_call.1} parent=5 // pred_fallthru
        _
    $region6: #{tpu_custom_call.1} parent=1 // loop_footer
      %s27 = sadd.s32 1, %s23
    $region7: #{tpu_custom_call.1} parent=1 // loop_footer_branch
      %22 = sbr.rel target = $region3
    $region8: #{tpu_custom_call.1} parent=1 // loop_exit
      _
    %1015 = vsyncpa [#allocation3], 1
    %s1016 = scalar_lea.sflag [#allocation3], 1
    %1017 = vsyncpa %s1016, 1
    %1018 = vsyncpa [#allocation6], 1
    %1019 = vsyncpa [#allocation9], 1
    %1020 = vsyncpa [#allocation4], 1
    %s1021 = scalar_lea.sflag [#allocation4], 1
    %1022 = vsyncpa %s1021, 1

</llo_original>
